<compile_context>
chip_gen: v7x
topology: tpu7x:2x2x1
jax: 0.10.0
libtpu: 0.0.40
codegen_flags: <defaults>
</compile_context>

<pallas_src>
import jax
import jax.numpy as jnp
from jax.experimental import pallas as pl
from jax.experimental.pallas import tpu as pltpu

_MAX_LANES = 2048  # lane-dense last-dim cap (multiple of 128)


# ---------------------------------------------------------------------------
# Path 1: direct HBM->HBM DMA copy (no VMEM round-trip).
# ---------------------------------------------------------------------------
def _dma_copy_kernel(x_hbm, o_hbm, sem):
    cp = pltpu.make_async_copy(x_hbm, o_hbm, sem)
    cp.start()
    cp.wait()


def dma_copy(x: jax.Array) -> jax.Array:
    """Materialize a copy of x with a single HBM->HBM DMA."""
    return pl.pallas_call(
        _dma_copy_kernel,
        out_shape=jax.ShapeDtypeStruct(x.shape, x.dtype),
        in_specs=[pl.BlockSpec(memory_space=pl.ANY)],
        out_specs=pl.BlockSpec(memory_space=pl.ANY),
        scratch_shapes=[pltpu.SemaphoreType.DMA],
    )(x)


# ---------------------------------------------------------------------------
# Path 2: lane-dense, row-tiled, double-buffered VMEM round-trip copy.
# ---------------------------------------------------------------------------
def _copy_kernel(x_ref, o_ref):
    o_ref[...] = x_ref[...]


def _hw_tile_params():
    """Generation-aware (max_tile_bytes, vmem_limit_bytes) for the tiled path."""
    try:
        info = pltpu.get_tpu_info()
        vmem = getattr(info, "vmem_capacity_bytes", None)
    except Exception:
        vmem = None
    if vmem is None:
        # Conservative default: safe on every generation with default scoped VMEM.
        return 2 << 20, None
    if vmem <= (64 << 20):
        # v7x-class: 64 MiB physical per TC.  6 MiB tile amortizes the ~0.35us
        # per-step overhead; 2 arrays x 2 buffers x 6 MiB = 24 MiB < 30 MiB limit.
        return 6 << 20, 30 << 20
    # v5e / v6e: 128 MiB physical.  Explicit limit covers v5e's 16 MiB scoped default.
    return 4 << 20, 24 << 20


def _lane_dense_shape(total: int):
    """Pick (rows, lanes): lanes a multiple of 128, rows a multiple of 8."""
    assert total % 1024 == 0
    for mult in range(_MAX_LANES // 128, 0, -1):
        lanes = 128 * mult
        if total % lanes:
            continue
        rows = total // lanes
        if rows % 8 == 0:
            return rows, lanes
    return total // 128, 128  # unreachable: lanes=128 always satisfies the loop


def _block_rows_for(rows: int, lanes: int, itemsize: int, max_tile_bytes: int) -> int:
    """Largest multiple of 8 that divides `rows` and keeps the tile <= budget."""
    budget_rows = max(8, (max_tile_bytes // (lanes * itemsize)) // 8 * 8)
    cap_units = max(1, min(rows, budget_rows) // 8)
    units = rows // 8
    best = 1
    d = 1
    while d * d <= units:
        if units % d == 0:
            if d <= cap_units:
                best = max(best, d)
            other = units // d
            if other <= cap_units:
                best = max(best, other)
        d += 1
    return best * 8


def tiled_copy(x: jax.Array, *, max_tile_bytes: int | None = None) -> jax.Array:
    """BlockSpec-pipelined identity copy (lane-dense, evenly-divided row tiles)."""
    orig_shape = x.shape
    total = x.size
    flat = x.reshape(-1)
    padded = ((total + 1023) // 1024) * 1024
    if padded != total:
        # Pad to a multiple of 8*128 so every tile is full (8,128)-aligned and
        # stores are unmasked lane-dense vst; the pad is sliced off afterwards.
        flat = jnp.pad(flat, (0, padded - total))
    rows, lanes = _lane_dense_shape(padded)
    x2d = flat.reshape(rows, lanes)
    itemsize = jnp.dtype(x2d.dtype).itemsize

    tile_bytes, vmem_limit = _hw_tile_params()
    if max_tile_bytes is not None:
        tile_bytes = max_tile_bytes
    block_rows = _block_rows_for(rows, lanes, itemsize, tile_bytes)

    grid = (rows // block_rows,)  # exact: block_rows divides rows
    out2d = pl.pallas_call(
        _copy_kernel,
        out_shape=jax.ShapeDtypeStruct(x2d.shape, x2d.dtype),
        grid=grid,
        in_specs=[pl.BlockSpec((block_rows, lanes), lambda i: (i, 0))],
        out_specs=pl.BlockSpec((block_rows, lanes), lambda i: (i, 0)),
        compiler_params=pltpu.CompilerParams(
            # Row axis is embarrassingly parallel.
            # TODO(synk): on v7x, verify both TCs are used; if not, switch to
            # pltpu.CORE_PARALLEL / pl.core_map over a tensorcore mesh.
            dimension_semantics=("parallel",),
            vmem_limit_bytes=vmem_limit,
        ),
    )(x2d)
    out = out2d.reshape(-1)
    if padded != total:
        out = out[:total]
    return out.reshape(orig_shape)


# ---------------------------------------------------------------------------
# Pass-through wrapper + module.
# ---------------------------------------------------------------------------
def identity_copy(x: jax.Array, *, materialize: bool = False) -> jax.Array:
    """Pass-through.  Default elides the kernel entirely (an identity copy is
    pure wasted HBM traffic); set materialize=True to force a real copy via a
    single HBM->HBM DMA."""
    if not materialize:
        return x
    return dma_copy(x)


class Network:
    """JAX/Pallas counterpart of the PyTorch `Network` stub."""

    def __init__(self, dfeat: int, _cfg=None):
        # The PyTorch __init__ registers no parameters; nothing to initialize.
        self.dfeat = dfeat

    def forward(self, x):
        # The reference forward body is empty and returns None; no kernel is
        # launched (any dead-work launch would be DCE'd under jit anyway).
        return None

    __call__ = forward


if __name__ == "__main__":
    key = jax.random.PRNGKey(0)
    B, C, H, W = 2, 4, 16, 16  # small NCHW input; dfeat := C
    x = jax.random.normal(key, (B, C, H, W), dtype=jnp.float32)

    net = Network(dfeat=C, _cfg=None)

    # 1) Kernel-elided identity (highest-value perf change): no launch at all.
    y0 = identity_copy(x)
    assert y0 is x

    # 2) Real materialized copy: single HBM->HBM DMA, no VMEM round-trip.
    y1 = jax.block_until_ready(identity_copy(x, materialize=True))
    assert y1.shape == x.shape and y1.dtype == x.dtype
    assert bool(jnp.allclose(y1, x)), "dma_copy mismatch"

    # 3) BlockSpec-pipelined tiled copy, multi-step grid (small tile cap).
    x2 = jax.random.normal(jax.random.PRNGKey(1), (2, 4, 32, 128), jnp.float32)
    y2 = jax.block_until_ready(tiled_copy(x2, max_tile_bytes=64 * 1024))
    assert y2.shape == x2.shape and y2.dtype == x2.dtype
    assert bool(jnp.allclose(y2, x2)), "tiled_copy mismatch (multi-step grid)"

    # 4) Non-128-divisible input: padded in the wrapper (no full-array block).
    x3 = jax.random.normal(jax.random.PRNGKey(2), (3, 5, 7), jnp.float32)
    y3 = jax.block_until_ready(tiled_copy(x3))
    assert y3.shape == x3.shape and bool(jnp.allclose(y3, x3)), "tiled_copy mismatch (padded)"

    # Faithful forward semantics: returns None, like the PyTorch module.
    assert net(x) is None

    print("KERNEL_OK")
</pallas_src>

<mosaic_0001>
module attributes {stable_mosaic.version = 11 : i64} {
  func.func @_dma_copy_kernel(%arg0: memref<2x4x16x16xf32, #tpu.memory_space<any>>, %arg1: memref<2x4x16x16xf32, #tpu.memory_space<any>>, %arg2: memref<!tpu.dma_semaphore, #tpu.memory_space<semaphore_mem>>) attributes {dimension_semantics = [], scalar_prefetch = 0 : i64, scratch_operands = 1 : i64, tpu.core_type = #tpu.core_type<tc>} {
    tpu.enqueue_dma source(%arg0 : memref<2x4x16x16xf32, #tpu.memory_space<any>>) target(%arg1 : memref<2x4x16x16xf32, #tpu.memory_space<any>>) target_semaphore(%arg2 : memref<!tpu.dma_semaphore, #tpu.memory_space<semaphore_mem>>)
    tpu.wait_dma2 semaphore(%arg2 : memref<!tpu.dma_semaphore, #tpu.memory_space<semaphore_mem>>) src(%arg0 : memref<2x4x16x16xf32, #tpu.memory_space<any>>) dst(%arg1 : memref<2x4x16x16xf32, #tpu.memory_space<any>>)
    return
  }
}

</mosaic_0001>

<llo_original>
// kernel: tpu_custom_call.1
$region0: #{tpu_custom_call.1}
  #allocation0 [shape = 'u32[]', space=smem, size = 0x4, offset = 0x4, fixed_abs, tag = 'smem constant byte address 0x4 - core index']
  #allocation1 [shape = 'u32[144,128]{1,0:T(1,128)}', space=vmem, size = 0x12000, scoped, tag = 'internal scratch']
  #allocation2 [shape = 's32[1]{0}', space=sflag, size = 0x4, scoped, tag = 'scratch operand']
  #allocation3 [shape = 's32[]', space=sflag, size = 0x4, offset = 0, fixed_abs, tag = 'sflag constant byte address 0x0 - dummy sync flag']
  #allocation4 [shape = 'u32[0]{0}', space=smem, size = 0, offset = 0, fixed_abs, tag = 'smem constant byte address 0x0 - null']
  %s0 = inlined_call_operand.hbm [shape: f32[2,4,16,16], index: 0, kind: input, shape index: {}]
  %s1 = inlined_call_operand.hbm [shape: f32[2,4,16,16], index: 1, kind: output, shape index: {}]
  %s2 = sld [smem:[#allocation0]]
  $region2: #{tpu_custom_call.1} parent=0
    _
  %s4 = ssub.s32 1, %s2
  %s5 = scalar_select 0, %s4, %s2
  %s7 = sshll.u32 1, 14
  %s8 = sxor.u32 4294967295, %s7
  %s11 = sshll.u32 3, 24
  %s12 = sxor.u32 4294967295, %s11
  %s13 = sand.u32 0, %s12
  %s15 = sor.u32 %s13, 0
  %18 = dma.general %s0, 2048, %s1, [#allocation2], [#allocation3], [#allocation4], %s15, 0
  %s19 = smul.u32 2, 4
  %s20 = smul.u32 %s19, 16
  %s21 = smul.u32 %s20, 1
  %s22 = sshll.u32 %s21, 4
  %23 = dma.done [#allocation2], %s22
  %24 = vsyncmov [#allocation2]
  %s25 = vpop.sfrf %24
  %p26 = scmp.eq.s32.totalorder %s25, 0
  %p27 = pneg %p26
  %29 = shalt.err (%p27)

</llo_original>
